<compile_context>
chip_gen: v6e
topology: v6e:2x2x1
jax: 0.10.0
libtpu: 0.0.40
codegen_flags: <defaults>
</compile_context>

<pallas_src>
import jax
import jax.numpy as jnp
from jax.experimental import pallas as pl
from jax.experimental.pallas import tpu as pltpu


# ----------------------------- helpers -------------------------------------

def _round_up(x, m):
    return ((x + m - 1) // m) * m


def _packed_width(H):
    """Lane-dense packed feature width for the fused pair of MLPs."""
    if 2 * H <= 128:
        return 128
    # Feed the full 256-wide MXU on v6e/v7x for larger widths.
    return _round_up(2 * H, 256)


def _pick_row_tile(M, target=2048):
    """Largest row tile <= target that divides M, preferring multiples of 128
    (lane-dim legality for the (2, tm) blocks)."""
    if M <= target:
        return M
    start = target - (target % 128)
    for t in range(start, 127, -128):
        if M % t == 0:
            return t
    # TODO(synk): for awkward M with no 128-multiple divisor, pad M instead of
    # falling back to a single (possibly large) block.
    return M


# ----------------------------- Pallas kernels ------------------------------

def _make_branch_kernel(n_linear):
    """Fused branch1||branch2 MLP: Linear -> tanh for all layers but the last."""
    def kernel(x_ref, *refs):
        out_ref = refs[-1]
        wb = refs[:-1]
        h = x_ref[...]
        for l in range(n_linear):
            w = wb[2 * l][...]
            b = wb[2 * l + 1][...]
            h = jnp.dot(h, w, preferred_element_type=jnp.float32) + b
            if l < n_linear - 1:
                h = jnp.tanh(h)
        out_ref[...] = h.astype(out_ref.dtype)
    return kernel


def branch_forward(x, ws, bs):
    """x: (B, in_dim) -> (B, Hp). Whole-array VMEM (branch work is tiny vs trunk)."""
    n_linear = len(ws)
    B = x.shape[0]
    Hp = ws[-1].shape[1]
    args = [x]
    for w, b in zip(ws, bs):
        args += [w, b]
    return pl.pallas_call(
        _make_branch_kernel(n_linear),
        out_shape=jax.ShapeDtypeStruct((B, Hp), jnp.float32),
        in_specs=[pl.BlockSpec(memory_space=pltpu.MemorySpace.VMEM)] * len(args),
        out_specs=pl.BlockSpec(memory_space=pltpu.MemorySpace.VMEM),
    )(*args)


def _make_trunk_kernel(n_hidden):
    """Fused trunk1||trunk2 MLP in transposed orientation (features x points),
    with the final contraction folded into a (2, Hp) x (Hp, TM) matmul."""
    def kernel(xy_ref, what_ref, bhat_ref, w0_ref, b0_ref, *refs):
        out_ref = refs[-1]
        wb = refs[:-1]

        x = xy_ref[0:1, :]                    # (1, TM)
        y = xy_ref[1:2, :]                    # (1, TM)

        # First layer on the VPU (avoids a degenerate K=2 MXU matmul), f32.
        w0 = w0_ref[...]                      # (Hp, 2)
        b0 = b0_ref[...]                      # (Hp, 1)
        h = jnp.tanh(w0[:, 0:1] * x + w0[:, 1:2] * y + b0)      # (Hp, TM) f32

        # Hidden layers: bf16 MXU operands, f32 accumulate, f32 tanh.
        for l in range(n_hidden):
            w = wb[2 * l][...]                # (Hp, Hp) bf16
            b = wb[2 * l + 1][...]            # (Hp, 1)  f32
            h = jnp.tanh(
                jnp.dot(w, h.astype(w.dtype), preferred_element_type=jnp.float32) + b)

        # Folded last layer + contraction with the per-batch enc vectors.
        what = what_ref[...]                  # (2, Hp) bf16
        uv = jnp.dot(what, h.astype(what.dtype),
                     preferred_element_type=jnp.float32) + bhat_ref[...]   # (2, TM)
        out_ref[...] = uv.astype(out_ref.dtype)
    return kernel


def trunk_forward(xy_T, w_hat_T, b_hat, w0_T, b0_T, hidden_ws, hidden_bs, *, tm=None):
    """xy_T: (B, 2, M); w_hat_T: (B, 2, Hp); b_hat: (B, 2, 1).
    Returns (B, 2, M) with row 0 = u, row 1 = v (lane-dense output)."""
    B, _, M = xy_T.shape
    Hp = w0_T.shape[0]
    n_hidden = len(hidden_ws)
    if tm is None:
        tm = _pick_row_tile(M)
    assert M % tm == 0
    grid = (B, M // tm)

    wb_args, wb_specs = [], []
    for w, b in zip(hidden_ws, hidden_bs):
        wb_args += [w, b]
        wb_specs += [pl.BlockSpec(w.shape, lambda bb, mi: (0, 0)),   # replicated
                     pl.BlockSpec(b.shape, lambda bb, mi: (0, 0))]

    return pl.pallas_call(
        _make_trunk_kernel(n_hidden),
        out_shape=jax.ShapeDtypeStruct((B, 2, M), jnp.float32),
        grid=grid,
        in_specs=[
            pl.BlockSpec((pl.Squeezed(), 2, tm), lambda bb, mi: (bb, 0, mi)),   # xy_T
            pl.BlockSpec((pl.Squeezed(), 2, Hp), lambda bb, mi: (bb, 0, 0)),    # W_hat^T
            pl.BlockSpec((pl.Squeezed(), 2, 1), lambda bb, mi: (bb, 0, 0)),     # b_hat
            pl.BlockSpec(w0_T.shape, lambda bb, mi: (0, 0)),                    # w0^T
            pl.BlockSpec(b0_T.shape, lambda bb, mi: (0, 0)),                    # b0^T
            *wb_specs,
        ],
        out_specs=pl.BlockSpec((pl.Squeezed(), 2, tm), lambda bb, mi: (bb, 0, mi)),
        compiler_params=pltpu.CompilerParams(
            dimension_semantics=("parallel", "parallel"),
            vmem_limit_bytes=32 * 1024 * 1024),
    )(xy_T, w_hat_T, b_hat, w0_T, b0_T, *wb_args)


# ------------------------- parameters / packing -----------------------------

def init_mlp_params(key, in_dim, hidden, n_layer):
    """PyTorch-like init. Linear layers = n_layer + 1:
    Linear(in,H), (n_layer-1) x [Linear(H,H)+Tanh], Linear(H,H)."""
    dims = [in_dim] + [hidden] * (n_layer + 1)
    ws, bs = [], []
    for i in range(len(dims) - 1):
        key, kw, kb = jax.random.split(key, 3)
        bound = 1.0 / float(dims[i]) ** 0.5
        w = jax.random.uniform(kw, (dims[i], dims[i + 1]), jnp.float32, -bound, bound)
        b = jax.random.uniform(kb, (1, dims[i + 1]), jnp.float32, -bound, bound)
        ws.append(w)
        bs.append(b)
    return ws, bs


def pack_pair_params(p1, p2, H, Hp):
    """Pack two independent MLPs (shared input) into one lane-dense MLP of width Hp.
    Layer 0: outputs concatenated; layers >=1: block-diagonal. Zero padding is exact."""
    ws1, bs1 = p1
    ws2, bs2 = p2
    L = len(ws1)
    in_dim = ws1[0].shape[0]
    ws, bs = [], []

    w0 = jnp.zeros((in_dim, Hp), jnp.float32)
    w0 = w0.at[:, :H].set(ws1[0]).at[:, H:2 * H].set(ws2[0])
    b0 = jnp.zeros((1, Hp), jnp.float32)
    b0 = b0.at[:, :H].set(bs1[0]).at[:, H:2 * H].set(bs2[0])
    ws.append(w0)
    bs.append(b0)

    for l in range(1, L):
        w = jnp.zeros((Hp, Hp), jnp.float32)
        w = w.at[:H, :H].set(ws1[l]).at[H:2 * H, H:2 * H].set(ws2[l])
        b = jnp.zeros((1, Hp), jnp.float32)
        b = b.at[:, :H].set(bs1[l]).at[:, H:2 * H].set(bs2[l])
        ws.append(w)
        bs.append(b)
    return ws, bs


def prepare_trunk_params(packed_trunk, mxu_dtype=jnp.bfloat16):
    """Transpose packed trunk weights for the feature-major kernel and pre-cast the
    hidden-layer MXU operands to bf16 once on the host.  The last packed layer is
    kept separate (f32) so it can be folded with the branch encodings per batch."""
    ws, bs = packed_trunk
    return {
        "w0_T": ws[0].T,                                           # (Hp, 2)  f32
        "b0_T": bs[0].T,                                           # (Hp, 1)  f32
        "hidden_ws": [w.T.astype(mxu_dtype) for w in ws[1:-1]],    # (Hp, Hp) bf16
        "hidden_bs": [b.T for b in bs[1:-1]],                      # (Hp, 1)  f32
        "wL": ws[-1],                                              # (Hp, Hp) f32
        "bL": bs[-1],                                              # (1, Hp)  f32
    }


# ------------------------------ forward ------------------------------------

def deeponet_plate_forward(packed, x_coor, y_coor, par):
    H = packed["H"]
    Hp = packed["Hp"]
    branch_ws, branch_bs = packed["branch"]
    trunk = packed["trunk"]
    B, M = x_coor.shape

    bc_vals = par[:, :, -1]                                   # (B, N_bc)
    enc = branch_forward(bc_vals, branch_ws, branch_bs)       # (B, Hp): [:H]=enc1, [H:2H]=enc2

    # Fold the final contraction into the last (activation-free) trunk layer:
    #   u = (h @ W_L + b_L) . enc  ==  h @ (W_L @ E) + b_L @ E     (exact)
    # E's column 0 carries enc1, column 1 carries enc2 (block structure via masks,
    # no zeros/scatter intermediates).
    idx = jnp.arange(Hp)
    mask = jnp.stack([(idx < H), (idx >= H) & (idx < 2 * H)], axis=-1).astype(jnp.float32)
    enc_cols = enc[:, :, None] * mask[None]                        # (B, Hp, 2)
    w_hat_T = jnp.einsum('io,boc->bci', trunk["wL"], enc_cols)     # (B, 2, Hp)
    b_hat = jnp.einsum('o,boc->bc', trunk["bL"][0], enc_cols)[:, :, None]   # (B, 2, 1)
    w_hat_T = w_hat_T.astype(jnp.bfloat16)                         # MXU operand

    xy_T = jnp.stack([x_coor, y_coor], axis=1)                     # (B, 2, M) lane-dense
    uv = trunk_forward(xy_T, w_hat_T, b_hat, trunk["w0_T"], trunk["b0_T"],
                       trunk["hidden_ws"], trunk["hidden_bs"])     # (B, 2, M)
    return uv[:, 0, :], uv[:, 1, :]


# ------------------------------ reference ----------------------------------

def _mlp_ref(x, weights, biases):
    h = x
    n = len(weights)
    for i, (w, b) in enumerate(zip(weights, biases)):
        h = h @ w + b
        if i < n - 1:
            h = jnp.tanh(h)
    return h


def ref_forward(raw_params, x_coor, y_coor, par):
    enc1 = _mlp_ref(par[:, :, -1], *raw_params["branch1"])
    enc2 = _mlp_ref(par[:, :, -1], *raw_params["branch2"])
    xy = jnp.concatenate([x_coor[..., None], y_coor[..., None]], axis=-1)
    ux = _mlp_ref(xy, *raw_params["trunk1"])
    uy = _mlp_ref(xy, *raw_params["trunk2"])
    u = jnp.einsum('bij,bj->bi', ux, enc1)
    v = jnp.einsum('bij,bj->bi', uy, enc2)
    return u, v


# --------------------------------- main ------------------------------------

if __name__ == "__main__":
    B, M, N_bc, H, N_layer = 2, 16, 8, 32, 3   # num_input_dim = N_bc, fc_dim = H
    Hp = _packed_width(H)                      # lane-dense packed feature width

    key = jax.random.PRNGKey(0)
    k1, k2, k3, k4, kx, ky, kp = jax.random.split(key, 7)
    raw_params = {
        "branch1": init_mlp_params(k1, N_bc, H, N_layer),
        "branch2": init_mlp_params(k2, N_bc, H, N_layer),
        "trunk1": init_mlp_params(k3, 2, H, N_layer),
        "trunk2": init_mlp_params(k4, 2, H, N_layer),
    }
    packed = {
        "H": H,
        "Hp": Hp,
        "branch": pack_pair_params(raw_params["branch1"], raw_params["branch2"], H, Hp),
        "trunk": prepare_trunk_params(
            pack_pair_params(raw_params["trunk1"], raw_params["trunk2"], H, Hp)),
    }

    x_coor = jax.random.uniform(kx, (B, M), jnp.float32)
    y_coor = jax.random.uniform(ky, (B, M), jnp.float32)
    par = jax.random.uniform(kp, (B, N_bc, 3), jnp.float32)

    u, v = deeponet_plate_forward(packed, x_coor, y_coor, par)
    jax.block_until_ready((u, v))

    u_ref, v_ref = ref_forward(raw_params, x_coor, y_coor, par)
    assert u.shape == (B, M) and v.shape == (B, M)
    # Tolerances loosened for the bf16 MXU-operand path (f32 accumulate).
    assert jnp.allclose(u, u_ref, atol=2e-2, rtol=2e-2)
    assert jnp.allclose(v, v_ref, atol=2e-2, rtol=2e-2)
    print("KERNEL_OK")
</pallas_src>

<mosaic_0001>
module attributes {stable_mosaic.version = 11 : i64} {
  func.func @kernel(%arg0: memref<2x8xf32, #tpu.memory_space<vmem>>, %arg1: memref<8x128xf32, #tpu.memory_space<vmem>>, %arg2: memref<1x128xf32, #tpu.memory_space<vmem>>, %arg3: memref<128x128xf32, #tpu.memory_space<vmem>>, %arg4: memref<1x128xf32, #tpu.memory_space<vmem>>, %arg5: memref<128x128xf32, #tpu.memory_space<vmem>>, %arg6: memref<1x128xf32, #tpu.memory_space<vmem>>, %arg7: memref<128x128xf32, #tpu.memory_space<vmem>>, %arg8: memref<1x128xf32, #tpu.memory_space<vmem>>, %arg9: memref<2x128xf32, #tpu.memory_space<vmem>>) attributes {dimension_semantics = [], scalar_prefetch = 0 : i64, scratch_operands = 0 : i64, tpu.core_type = #tpu.core_type<tc>} {
    %c0 = arith.constant 0 : index
    %c0_0 = arith.constant 0 : index
    %0 = vector.load %arg0[%c0, %c0_0] : memref<2x8xf32, #tpu.memory_space<vmem>>, vector<2x8xf32>
    %c0_1 = arith.constant 0 : index
    %c0_2 = arith.constant 0 : index
    %1 = vector.load %arg1[%c0_1, %c0_2] : memref<8x128xf32, #tpu.memory_space<vmem>>, vector<8x128xf32>
    %c0_3 = arith.constant 0 : index
    %c0_4 = arith.constant 0 : index
    %2 = vector.load %arg2[%c0_3, %c0_4] : memref<1x128xf32, #tpu.memory_space<vmem>>, vector<1x128xf32>
    %cst = arith.constant dense<0.000000e+00> : vector<2x128xf32>
    %3 = tpu.matmul %0, %1, %cst {dimension_numbers = #tpu.dot_dimension_numbers<[1], [0], [0], [1], [0, 0, 1, 1], [], []>} : vector<2x8xf32>, vector<8x128xf32>, vector<2x128xf32> -> vector<2x128xf32>
    %4 = vector.broadcast %2 : vector<1x128xf32> to vector<2x128xf32>
    %5 = arith.addf %3, %4 : vector<2x128xf32>
    %6 = math.tanh %5 : vector<2x128xf32>
    %c0_5 = arith.constant 0 : index
    %c0_6 = arith.constant 0 : index
    %7 = vector.load %arg3[%c0_5, %c0_6] : memref<128x128xf32, #tpu.memory_space<vmem>>, vector<128x128xf32>
    %c0_7 = arith.constant 0 : index
    %c0_8 = arith.constant 0 : index
    %8 = vector.load %arg4[%c0_7, %c0_8] : memref<1x128xf32, #tpu.memory_space<vmem>>, vector<1x128xf32>
    %cst_9 = arith.constant dense<0.000000e+00> : vector<2x128xf32>
    %9 = tpu.matmul %6, %7, %cst_9 {dimension_numbers = #tpu.dot_dimension_numbers<[1], [0], [0], [1], [0, 0, 1, 1], [], []>} : vector<2x128xf32>, vector<128x128xf32>, vector<2x128xf32> -> vector<2x128xf32>
    %10 = vector.broadcast %8 : vector<1x128xf32> to vector<2x128xf32>
    %11 = arith.addf %9, %10 : vector<2x128xf32>
    %12 = math.tanh %11 : vector<2x128xf32>
    %c0_10 = arith.constant 0 : index
    %c0_11 = arith.constant 0 : index
    %13 = vector.load %arg5[%c0_10, %c0_11] : memref<128x128xf32, #tpu.memory_space<vmem>>, vector<128x128xf32>
    %c0_12 = arith.constant 0 : index
    %c0_13 = arith.constant 0 : index
    %14 = vector.load %arg6[%c0_12, %c0_13] : memref<1x128xf32, #tpu.memory_space<vmem>>, vector<1x128xf32>
    %cst_14 = arith.constant dense<0.000000e+00> : vector<2x128xf32>
    %15 = tpu.matmul %12, %13, %cst_14 {dimension_numbers = #tpu.dot_dimension_numbers<[1], [0], [0], [1], [0, 0, 1, 1], [], []>} : vector<2x128xf32>, vector<128x128xf32>, vector<2x128xf32> -> vector<2x128xf32>
    %16 = vector.broadcast %14 : vector<1x128xf32> to vector<2x128xf32>
    %17 = arith.addf %15, %16 : vector<2x128xf32>
    %18 = math.tanh %17 : vector<2x128xf32>
    %c0_15 = arith.constant 0 : index
    %c0_16 = arith.constant 0 : index
    %19 = vector.load %arg7[%c0_15, %c0_16] : memref<128x128xf32, #tpu.memory_space<vmem>>, vector<128x128xf32>
    %c0_17 = arith.constant 0 : index
    %c0_18 = arith.constant 0 : index
    %20 = vector.load %arg8[%c0_17, %c0_18] : memref<1x128xf32, #tpu.memory_space<vmem>>, vector<1x128xf32>
    %cst_19 = arith.constant dense<0.000000e+00> : vector<2x128xf32>
    %21 = tpu.matmul %18, %19, %cst_19 {dimension_numbers = #tpu.dot_dimension_numbers<[1], [0], [0], [1], [0, 0, 1, 1], [], []>} : vector<2x128xf32>, vector<128x128xf32>, vector<2x128xf32> -> vector<2x128xf32>
    %22 = vector.broadcast %20 : vector<1x128xf32> to vector<2x128xf32>
    %23 = arith.addf %21, %22 : vector<2x128xf32>
    %c0_20 = arith.constant 0 : index
    %c0_21 = arith.constant 0 : index
    %24 = vector.load %arg9[%c0_20, %c0_21] : memref<2x128xf32, #tpu.memory_space<vmem>>, vector<2x128xf32>
    tpu.vector_store %arg9[%c0_20, %c0_21], %23 {strides = array<i32>} : memref<2x128xf32, #tpu.memory_space<vmem>>, vector<2x128xf32>,
    return
  }
}

</mosaic_0001>

<llo_original>
// kernel: tpu_custom_call.1
$region0: #{tpu_custom_call.1}
  #allocation0 [shape = 'u32[]', space=smem, size = 0x4, offset = 0x4, fixed_abs, tag = 'smem constant byte address 0x4 - core index']
  #allocation1 [shape = 'u32[144,128]{1,0:T(1,128)}', space=vmem, size = 0x12000, scoped, tag = 'internal scratch']
  %s0 = inlined_call_operand.hbm [shape: f32[2,8], index: 0, kind: input, shape index: {}]
  %s1 = inlined_call_operand.hbm [shape: f32[8,128], index: 1, kind: input, shape index: {}]
  %s2 = inlined_call_operand.vmem [shape: f32[1,128], index: 2, kind: input, shape index: {}]
  %s3 = inlined_call_operand.hbm [shape: f32[128,128], index: 3, kind: input, shape index: {}]
  %s4 = inlined_call_operand.vmem [shape: f32[1,128], index: 4, kind: input, shape index: {}]
  %s5 = inlined_call_operand.hbm [shape: f32[128,128], index: 5, kind: input, shape index: {}]
  %s6 = inlined_call_operand.vmem [shape: f32[1,128], index: 6, kind: input, shape index: {}]
  %s7 = inlined_call_operand.hbm [shape: f32[128,128], index: 7, kind: input, shape index: {}]
  %s8 = inlined_call_operand.vmem [shape: f32[1,128], index: 8, kind: input, shape index: {}]
  %s9 = inlined_call_operand.hbm [shape: f32[2,128], index: 9, kind: output, shape index: {}]
  %s10 = sld [smem:[#allocation0]]
  $region66: #{tpu_custom_call.1} parent=0
    _
  %s12 = ssub.s32 1, %s10
  %s13 = scalar_select 0, %s12, %s10
  $region1: #{tpu_custom_call.1} parent=0
    #allocation2 [shape = 'u8[1024]{0}', space=vmem, size = 0x400, scoped, tag = 'input window, operand 0, single buffered']
    #allocation3 [shape = 's32[1]{0}', space=sflag, size = 0x4, scoped, tag = 'scoped memory for tpu_custom_call.1']
    #allocation4 [shape = 's32[1]{0}', space=sflag, size = 0x4, scoped, tag = 'scoped memory for tpu_custom_call.1']
    #allocation5 [shape = 'u8[4096]{0}', space=vmem, size = 0x1000, scoped, tag = 'input window, operand 1, single buffered']
    #allocation6 [shape = 's32[1]{0}', space=sflag, size = 0x4, scoped, tag = 'scoped memory for tpu_custom_call.1']
    #allocation7 [shape = 'u8[65536]{0}', space=vmem, size = 0x10000, scoped, tag = 'input window, operand 3, single buffered']
    #allocation8 [shape = 'u8[65536]{0}', space=vmem, size = 0x10000, scoped, tag = 'input window, operand 5, single buffered']
    #allocation9 [shape = 's32[1]{0}', space=sflag, size = 0x4, scoped, tag = 'scoped memory for tpu_custom_call.1']
    #allocation10 [shape = 'u8[65536]{0}', space=vmem, size = 0x10000, scoped, tag = 'input window, operand 7, single buffered']
    #allocation11 [shape = 'u8[1024]{0}', space=vmem, size = 0x400, scoped, tag = 'output window, operand 0, single buffered']
    %14 = vsyncpa [#allocation3], 0
    %15 = vsyncpa [#allocation6], 0
    %16 = vsyncpa [#allocation9], 0
    %17 = vsyncpa [#allocation4], 0
    // Predicated region
    $region2: #{tpu_custom_call.1} parent=1 // pred_check
      _
    $region3: #{tpu_custom_call.1} parent=1 // pred_check_branch
      %19 = sbr.rel (0) target = $region5
    $region4: #{tpu_custom_call.1} parent=1 // pred_region
      %s21 = ssub.s32 32, 32
      %22 = vsyncadd [#allocation3], %s21
      %s24 = sshll.u32 [#allocation2], 4
      %s25 = int_to_ptr.vmem [resolvable:$true] %s24
      %27 = dma.hbm_to_vmem [thread:$0]  %s0, 32, %s25, [#allocation3]
    $region5: #{tpu_custom_call.1} parent=1 // pred_fallthru
      _
    // Predicated region
    $region6: #{tpu_custom_call.1} parent=1 // pred_check
      _
    $region7: #{tpu_custom_call.1} parent=1 // pred_check_branch
      %29 = sbr.rel (0) target = $region9
    $region8: #{tpu_custom_call.1} parent=1 // pred_region
      %s31 = ssub.s32 128, 128
      %32 = vsyncadd [#allocation6], %s31
      %s34 = sshll.u32 [#allocation5], 4
      %s35 = int_to_ptr.vmem [resolvable:$true] %s34
      %37 = dma.hbm_to_vmem [thread:$0]  %s1, 128, %s35, [#allocation6]
    $region9: #{tpu_custom_call.1} parent=1 // pred_fallthru
      _
    // Predicated region
    $region10: #{tpu_custom_call.1} parent=1 // pred_check
      _
    $region11: #{tpu_custom_call.1} parent=1 // pred_check_branch
      %39 = sbr.rel (0) target = $region13
    $region12: #{tpu_custom_call.1} parent=1 // pred_region
      _
    $region13: #{tpu_custom_call.1} parent=1 // pred_fallthru
      _
    // Predicated region
    $region14: #{tpu_custom_call.1} parent=1 // pred_check
      _
    $region15: #{tpu_custom_call.1} parent=1 // pred_check_branch
      %41 = sbr.rel (0) target = $region17
    $region16: #{tpu_custom_call.1} parent=1 // pred_region
      %s43 = ssub.s32 2048, 2048
      %44 = vsyncadd [#allocation6], %s43
      %s45 = sshll.u32 [#allocation7], 4
      %s46 = int_to_ptr.vmem [resolvable:$true] %s45
      %51 = dma.hbm_to_vmem [thread:$0]  %s3, 2048, %s46, [#allocation6], 128, 128, 8
    $region17: #{tpu_custom_call.1} parent=1 // pred_fallthru
      _
    // Predicated region
    $region18: #{tpu_custom_call.1} parent=1 // pred_check
      _
    $region19: #{tpu_custom_call.1} parent=1 // pred_check_branch
      %53 = sbr.rel (0) target = $region21
    $region20: #{tpu_custom_call.1} parent=1 // pred_region
      _
    $region21: #{tpu_custom_call.1} parent=1 // pred_fallthru
      _
    // Predicated region
    $region22: #{tpu_custom_call.1} parent=1 // pred_check
      _
    $region23: #{tpu_custom_call.1} parent=1 // pred_check_branch
      %55 = sbr.rel (0) target = $region25
    $region24: #{tpu_custom_call.1} parent=1 // pred_region
      %s57 = ssub.s32 2048, 2048
      %58 = vsyncadd [#allocation9], %s57
      %s59 = sshll.u32 [#allocation8], 4
      %s60 = int_to_ptr.vmem [resolvable:$true] %s59
      %65 = dma.hbm_to_vmem [thread:$0]  %s5, 2048, %s60, [#allocation9], 128, 128, 8
    $region25: #{tpu_custom_call.1} parent=1 // pred_fallthru
      _
    // Predicated region
    $region26: #{tpu_custom_call.1} parent=1 // pred_check
      _
    $region27: #{tpu_custom_call.1} parent=1 // pred_check_branch
      %67 = sbr.rel (0) target = $region29
    $region28: #{tpu_custom_call.1} parent=1 // pred_region
      _
    $region29: #{tpu_custom_call.1} parent=1 // pred_fallthru
      _
    // Predicated region
    $region30: #{tpu_custom_call.1} parent=1 // pred_check
      _
    $region31: #{tpu_custom_call.1} parent=1 // pred_check_branch
      %69 = sbr.rel (0) target = $region33
    $region32: #{tpu_custom_call.1} parent=1 // pred_region
      %s71 = ssub.s32 2048, 2048
      %72 = vsyncadd [#allocation9], %s71
      %s73 = sshll.u32 [#allocation10], 4
      %s74 = int_to_ptr.vmem [resolvable:$true] %s73
      %79 = dma.hbm_to_vmem [thread:$0]  %s7, 2048, %s74, [#allocation9], 128, 128, 8
    $region33: #{tpu_custom_call.1} parent=1 // pred_fallthru
      _
    // Predicated region
    $region34: #{tpu_custom_call.1} parent=1 // pred_check
      _
    $region35: #{tpu_custom_call.1} parent=1 // pred_check_branch
      %81 = sbr.rel (0) target = $region37
    $region36: #{tpu_custom_call.1} parent=1 // pred_region
      _
    $region37: #{tpu_custom_call.1} parent=1 // pred_fallthru
      _
    // Predicated region
    $region38: #{tpu_custom_call.1} parent=1 // pred_check
      _
    $region39: #{tpu_custom_call.1} parent=1 // pred_check_branch
      %83 = sbr.rel (0) target = $region41
    $region40: #{tpu_custom_call.1} parent=1 // pred_region
      %84 = dma.done [#allocation3], 32
    $region41: #{tpu_custom_call.1} parent=1 // pred_fallthru
      _
    // Predicated region
    $region42: #{tpu_custom_call.1} parent=1 // pred_check
      _
    $region43: #{tpu_custom_call.1} parent=1 // pred_check_branch
      %86 = sbr.rel (0) target = $region45
    $region44: #{tpu_custom_call.1} parent=1 // pred_region
      %87 = dma.done [#allocation6], 128
    $region45: #{tpu_custom_call.1} parent=1 // pred_fallthru
      _
    // Predicated region
    $region46: #{tpu_custom_call.1} parent=1 // pred_check
      _
    $region47: #{tpu_custom_call.1} parent=1 // pred_check_branch
      %89 = sbr.rel (0) target = $region49
    $region48: #{tpu_custom_call.1} parent=1 // pred_region
      %90 = dma.done [#allocation6], 2048
    $region49: #{tpu_custom_call.1} parent=1 // pred_fallthru
      _
    // Predicated region
    $region50: #{tpu_custom_call.1} parent=1 // pred_check
      _
    $region51: #{tpu_custom_call.1} parent=1 // pred_check_branch
      %92 = sbr.rel (0) target = $region53
    $region52: #{tpu_custom_call.1} parent=1 // pred_region
      %93 = dma.done [#allocation9], 2048
    $region53: #{tpu_custom_call.1} parent=1 // pred_fallthru
      _
    // Predicated region
    $region54: #{tpu_custom_call.1} parent=1 // pred_check
      _
    $region55: #{tpu_custom_call.1} parent=1 // pred_check_branch
      %95 = sbr.rel (0) target = $region57
    $region56: #{tpu_custom_call.1} parent=1 // pred_region
      %96 = dma.done [#allocation9], 2048
    $region57: #{tpu_custom_call.1} parent=1 // pred_fallthru
      _
    %v97 = vld [vmem:[#allocation2] sm:$0x3]
    %v98 = vld [vmem:[#allocation5] sm:$0xff]
    %v99 = vld [vmem:[%s2] sm:$0x1]
    %v101 = vlaneseq
    %v102 = vshrl.u32 %v101, 7
    %v103 = vsub.s32 0, %v102
    %v104 = vrot.slane %v99, %v103
    %vm106 = vcmask 64512
    %v108 = vsel %vm106, %v97, 0
    %110 = vmatprep.subr.mxu0 0.0
    %111 = vmatpush1.msra.mxu0 0.0
    %112 = vmatprep.subr.mxu0 0.0
    %113 = vmatpush1.msra.mxu0 0.0
    %114 = vmatprep.subr.mxu0 0.0
    %115 = vmatpush1.msra.mxu0 0.0
    %116 = vmatprep.subr.mxu0 0.0
    %117 = vmatpush1.msra.mxu0 0.0
    %118 = vmatprep.subr.mxu0 0.0
    %119 = vmatpush1.msra.mxu0 0.0
    %120 = vmatprep.subr.mxu0 0.0
    %121 = vmatpush1.msra.mxu0 0.0
    %122 = vmatprep.subr.mxu0 0.0
    %123 = vmatpush1.msra.mxu0 0.0
    %124 = vmatprep.subr.mxu0 0.0
    %125 = vmatpush1.msra.mxu0 0.0
    %126 = vmatprep.subr.mxu0 0.0
    %127 = vmatpush1.msra.mxu0 0.0
    %128 = vmatprep.subr.mxu0 0.0
    %129 = vmatpush1.msra.mxu0 0.0
    %130 = vmatprep.subr.mxu0 0.0
    %131 = vmatpush1.msra.mxu0 0.0
    %132 = vmatprep.subr.mxu0 0.0
    %133 = vmatpush1.msra.mxu0 0.0
    %134 = vmatprep.subr.mxu0 0.0
    %135 = vmatpush1.msra.mxu0 0.0
    %136 = vmatprep.subr.mxu0 0.0
    %137 = vmatpush1.msra.mxu0 0.0
    %138 = vmatprep.subr.mxu0 0.0
    %139 = vmatpush1.msra.mxu0 0.0
    %140 = vmatprep.subr.mxu0 0.0
    %141 = vmatpush1.msra.mxu0 %v98
    %142 = vmatprep.subr.mxu0 0.0
    %143 = vmatpush2.msra.mxu0 0.0
    %144 = vmatprep.subr.mxu0 0.0
    %145 = vmatpush2.msra.mxu0 0.0
    %146 = vmatprep.subr.mxu0 0.0
    %147 = vmatpush2.msra.mxu0 0.0
    %148 = vmatprep.subr.mxu0 0.0
    %149 = vmatpush2.msra.mxu0 0.0
    %150 = vmatprep.subr.mxu0 0.0
    %151 = vmatpush2.msra.mxu0 0.0
    %152 = vmatprep.subr.mxu0 0.0
    %153 = vmatpush2.msra.mxu0 0.0
    %154 = vmatprep.subr.mxu0 0.0
    %155 = vmatpush2.msra.mxu0 0.0
    %156 = vmatprep.subr.mxu0 0.0
    %157 = vmatpush2.msra.mxu0 0.0
    %158 = vmatprep.subr.mxu0 0.0
    %159 = vmatpush2.msra.mxu0 0.0
    %160 = vmatprep.subr.mxu0 0.0
    %161 = vmatpush2.msra.mxu0 0.0
    %162 = vmatprep.subr.mxu0 0.0
    %163 = vmatpush2.msra.mxu0 0.0
    %164 = vmatprep.subr.mxu0 0.0
    %165 = vmatpush2.msra.mxu0 0.0
    %166 = vmatprep.subr.mxu0 0.0
    %167 = vmatpush2.msra.mxu0 0.0
    %168 = vmatprep.subr.mxu0 0.0
    %169 = vmatpush2.msra.mxu0 0.0
    %170 = vmatprep.subr.mxu0 0.0
    %171 = vmatpush2.msra.mxu0 0.0
    %172 = vmatprep.subr.mxu0 0.0
    %173 = vmatpush2.msra.mxu0 0.0
    %174 = vmatprep.mubr.f32.mxu0 0.0
    %175 = vmatmul.mubr.f32.gmra.mxu0 %v108
    %v176 = vpop.f32.mrf.mxu0
    %v177 = vadd.f32 %v104, %v176
    %v178 = vpop.f32.mrf.mxu0
    %179 = vdwg.mxu0
    %v180 = vtanh.pop %v177
    %v181 = vld [vmem:[#allocation7] sm:$0xff]
    %v182 = vld [vmem:[#allocation7 + $0x8] sm:$0xff]
    %v183 = vld [vmem:[#allocation7 + $0x10] sm:$0xff]
    %v184 = vld [vmem:[#allocation7 + $0x18] sm:$0xff]
    %v185 = vld [vmem:[#allocation7 + $0x20] sm:$0xff]
    %v186 = vld [vmem:[#allocation7 + $0x28] sm:$0xff]
    %v187 = vld [vmem:[#allocation7 + $0x30] sm:$0xff]
    %v188 = vld [vmem:[#allocation7 + $0x38] sm:$0xff]
    %v189 = vld [vmem:[#allocation7 + $0x40] sm:$0xff]
    %v190 = vld [vmem:[#allocation7 + $0x48] sm:$0xff]
    %v191 = vld [vmem:[#allocation7 + $0x50] sm:$0xff]
    %v192 = vld [vmem:[#allocation7 + $0x58] sm:$0xff]
    %v193 = vld [vmem:[#allocation7 + $0x60] sm:$0xff]
    %v194 = vld [vmem:[#allocation7 + $0x68] sm:$0xff]
    %v195 = vld [vmem:[#allocation7 + $0x70] sm:$0xff]
    %v196 = vld [vmem:[#allocation7 + $0x78] sm:$0xff]
    %v197 = vld [vmem:[%s4] sm:$0x1]
    %v199 = vlaneseq
    %v200 = vshrl.u32 %v199, 7
    %v201 = vsub.s32 0, %v200
    %v202 = vrot.slane %v197, %v201
    %204 = vmatprep.subr.mxu0 0.0
    %205 = vmatpush1.msra.mxu0 %v196
    %206 = vmatprep.subr.mxu0 0.0
    %207 = vmatpush1.msra.mxu0 %v195
    %208 = vmatprep.subr.mxu0 0.0
    %209 = vmatpush1.msra.mxu0 %v194
    %210 = vmatprep.subr.mxu0 0.0
    %211 = vmatpush1.msra.mxu0 %v193
    %212 = vmatprep.subr.mxu0 0.0
    %213 = vmatpush1.msra.mxu0 %v192
    %214 = vmatprep.subr.mxu0 0.0
    %215 = vmatpush1.msra.mxu0 %v191
    %216 = vmatprep.subr.mxu0 0.0
    %217 = vmatpush1.msra.mxu0 %v190
    %218 = vmatprep.subr.mxu0 0.0
    %219 = vmatpush1.msra.mxu0 %v189
    %220 = vmatprep.subr.mxu0 0.0
    %221 = vmatpush1.msra.mxu0 %v188
    %222 = vmatprep.subr.mxu0 0.0
    %223 = vmatpush1.msra.mxu0 %v187
    %224 = vmatprep.subr.mxu0 0.0
    %225 = vmatpush1.msra.mxu0 %v186
    %226 = vmatprep.subr.mxu0 0.0
    %227 = vmatpush1.msra.mxu0 %v185
    %228 = vmatprep.subr.mxu0 0.0
    %229 = vmatpush1.msra.mxu0 %v184
    %230 = vmatprep.subr.mxu0 0.0
    %231 = vmatpush1.msra.mxu0 %v183
    %232 = vmatprep.subr.mxu0 0.0
    %233 = vmatpush1.msra.mxu0 %v182
    %234 = vmatprep.subr.mxu0 0.0
    %235 = vmatpush1.msra.mxu0 %v181
    %236 = vmatprep.subr.mxu0 0.0
    %237 = vmatpush2.msra.mxu0 0.0
    %238 = vmatprep.subr.mxu0 0.0
    %239 = vmatpush2.msra.mxu0 0.0
    %240 = vmatprep.subr.mxu0 0.0
    %241 = vmatpush2.msra.mxu0 0.0
    %242 = vmatprep.subr.mxu0 0.0
    %243 = vmatpush2.msra.mxu0 0.0
    %244 = vmatprep.subr.mxu0 0.0
    %245 = vmatpush2.msra.mxu0 0.0
    %246 = vmatprep.subr.mxu0 0.0
    %247 = vmatpush2.msra.mxu0 0.0
    %248 = vmatprep.subr.mxu0 0.0
    %249 = vmatpush2.msra.mxu0 0.0
    %250 = vmatprep.subr.mxu0 0.0
    %251 = vmatpush2.msra.mxu0 0.0
    %252 = vmatprep.subr.mxu0 0.0
    %253 = vmatpush2.msra.mxu0 0.0
    %254 = vmatprep.subr.mxu0 0.0
    %255 = vmatpush2.msra.mxu0 0.0
    %256 = vmatprep.subr.mxu0 0.0
    %257 = vmatpush2.msra.mxu0 0.0
    %258 = vmatprep.subr.mxu0 0.0
    %259 = vmatpush2.msra.mxu0 0.0
    %260 = vmatprep.subr.mxu0 0.0
    %261 = vmatpush2.msra.mxu0 0.0
    %262 = vmatprep.subr.mxu0 0.0
    %263 = vmatpush2.msra.mxu0 0.0
    %264 = vmatprep.subr.mxu0 0.0
    %265 = vmatpush2.msra.mxu0 0.0
    %266 = vmatprep.subr.mxu0 0.0
    %267 = vmatpush2.msra.mxu0 0.0
    %268 = vmatprep.mubr.f32.mxu0 0.0
    %269 = vmatmul.mubr.f32.gmra.mxu0 %v180
    %v270 = vpop.f32.mrf.mxu0
    %v271 = vadd.f32 %v202, %v270
    %v272 = vpop.f32.mrf.mxu0
    %273 = vdwg.mxu0
    %v274 = vtanh.pop %v271
    %v275 = vld [vmem:[#allocation8] sm:$0xff]
    %v276 = vld [vmem:[#allocation8 + $0x8] sm:$0xff]
    %v277 = vld [vmem:[#allocation8 + $0x10] sm:$0xff]
    %v278 = vld [vmem:[#allocation8 + $0x18] sm:$0xff]
    %v279 = vld [vmem:[#allocation8 + $0x20] sm:$0xff]
    %v280 = vld [vmem:[#allocation8 + $0x28] sm:$0xff]
    %v281 = vld [vmem:[#allocation8 + $0x30] sm:$0xff]
    %v282 = vld [vmem:[#allocation8 + $0x38] sm:$0xff]
    %v283 = vld [vmem:[#allocation8 + $0x40] sm:$0xff]
    %v284 = vld [vmem:[#allocation8 + $0x48] sm:$0xff]
    %v285 = vld [vmem:[#allocation8 + $0x50] sm:$0xff]
    %v286 = vld [vmem:[#allocation8 + $0x58] sm:$0xff]
    %v287 = vld [vmem:[#allocation8 + $0x60] sm:$0xff]
    %v288 = vld [vmem:[#allocation8 + $0x68] sm:$0xff]
    %v289 = vld [vmem:[#allocation8 + $0x70] sm:$0xff]
    %v290 = vld [vmem:[#allocation8 + $0x78] sm:$0xff]
    %v291 = vld [vmem:[%s6] sm:$0x1]
    %v293 = vlaneseq
    %v294 = vshrl.u32 %v293, 7
    %v295 = vsub.s32 0, %v294
    %v296 = vrot.slane %v291, %v295
    %298 = vmatprep.subr.mxu0 0.0
    %299 = vmatpush1.msra.mxu0 %v290
    %300 = vmatprep.subr.mxu0 0.0
    %301 = vmatpush1.msra.mxu0 %v289
    %302 = vmatprep.subr.mxu0 0.0
    %303 = vmatpush1.msra.mxu0 %v288
    %304 = vmatprep.subr.mxu0 0.0
    %305 = vmatpush1.msra.mxu0 %v287
    %306 = vmatprep.subr.mxu0 0.0
    %307 = vmatpush1.msra.mxu0 %v286
    %308 = vmatprep.subr.mxu0 0.0
    %309 = vmatpush1.msra.mxu0 %v285
    %310 = vmatprep.subr.mxu0 0.0
    %311 = vmatpush1.msra.mxu0 %v284
    %312 = vmatprep.subr.mxu0 0.0
    %313 = vmatpush1.msra.mxu0 %v283
    %314 = vmatprep.subr.mxu0 0.0
    %315 = vmatpush1.msra.mxu0 %v282
    %316 = vmatprep.subr.mxu0 0.0
    %317 = vmatpush1.msra.mxu0 %v281
    %318 = vmatprep.subr.mxu0 0.0
    %319 = vmatpush1.msra.mxu0 %v280
    %320 = vmatprep.subr.mxu0 0.0
    %321 = vmatpush1.msra.mxu0 %v279
    %322 = vmatprep.subr.mxu0 0.0
    %323 = vmatpush1.msra.mxu0 %v278
    %324 = vmatprep.subr.mxu0 0.0
    %325 = vmatpush1.msra.mxu0 %v277
    %326 = vmatprep.subr.mxu0 0.0
    %327 = vmatpush1.msra.mxu0 %v276
    %328 = vmatprep.subr.mxu0 0.0
    %329 = vmatpush1.msra.mxu0 %v275
    %330 = vmatprep.subr.mxu0 0.0
    %331 = vmatpush2.msra.mxu0 0.0
    %332 = vmatprep.subr.mxu0 0.0
    %333 = vmatpush2.msra.mxu0 0.0
    %334 = vmatprep.subr.mxu0 0.0
    %335 = vmatpush2.msra.mxu0 0.0
    %336 = vmatprep.subr.mxu0 0.0
    %337 = vmatpush2.msra.mxu0 0.0
    %338 = vmatprep.subr.mxu0 0.0
    %339 = vmatpush2.msra.mxu0 0.0
    %340 = vmatprep.subr.mxu0 0.0
    %341 = vmatpush2.msra.mxu0 0.0
    %342 = vmatprep.subr.mxu0 0.0
    %343 = vmatpush2.msra.mxu0 0.0
    %344 = vmatprep.subr.mxu0 0.0
    %345 = vmatpush2.msra.mxu0 0.0
    %346 = vmatprep.subr.mxu0 0.0
    %347 = vmatpush2.msra.mxu0 0.0
    %348 = vmatprep.subr.mxu0 0.0
    %349 = vmatpush2.msra.mxu0 0.0
    %350 = vmatprep.subr.mxu0 0.0
    %351 = vmatpush2.msra.mxu0 0.0
    %352 = vmatprep.subr.mxu0 0.0
    %353 = vmatpush2.msra.mxu0 0.0
    %354 = vmatprep.subr.mxu0 0.0
    %355 = vmatpush2.msra.mxu0 0.0
    %356 = vmatprep.subr.mxu0 0.0
    %357 = vmatpush2.msra.mxu0 0.0
    %358 = vmatprep.subr.mxu0 0.0
    %359 = vmatpush2.msra.mxu0 0.0
    %360 = vmatprep.subr.mxu0 0.0
    %361 = vmatpush2.msra.mxu0 0.0
    %362 = vmatprep.mubr.f32.mxu0 0.0
    %363 = vmatmul.mubr.f32.gmra.mxu0 %v274
    %v364 = vpop.f32.mrf.mxu0
    %v365 = vadd.f32 %v296, %v364
    %v366 = vpop.f32.mrf.mxu0
    %367 = vdwg.mxu0
    %v368 = vtanh.pop %v365
    %v369 = vld [vmem:[#allocation10] sm:$0xff]
    %v370 = vld [vmem:[#allocation10 + $0x8] sm:$0xff]
    %v371 = vld [vmem:[#allocation10 + $0x10] sm:$0xff]
    %v372 = vld [vmem:[#allocation10 + $0x18] sm:$0xff]
    %v373 = vld [vmem:[#allocation10 + $0x20] sm:$0xff]
    %v374 = vld [vmem:[#allocation10 + $0x28] sm:$0xff]
    %v375 = vld [vmem:[#allocation10 + $0x30] sm:$0xff]
    %v376 = vld [vmem:[#allocation10 + $0x38] sm:$0xff]
    %v377 = vld [vmem:[#allocation10 + $0x40] sm:$0xff]
    %v378 = vld [vmem:[#allocation10 + $0x48] sm:$0xff]
    %v379 = vld [vmem:[#allocation10 + $0x50] sm:$0xff]
    %v380 = vld [vmem:[#allocation10 + $0x58] sm:$0xff]
    %v381 = vld [vmem:[#allocation10 + $0x60] sm:$0xff]
    %v382 = vld [vmem:[#allocation10 + $0x68] sm:$0xff]
    %v383 = vld [vmem:[#allocation10 + $0x70] sm:$0xff]
    %v384 = vld [vmem:[#allocation10 + $0x78] sm:$0xff]
    %v385 = vld [vmem:[%s8] sm:$0x1]
    %v387 = vlaneseq
    %v388 = vshrl.u32 %v387, 7
    %v389 = vsub.s32 0, %v388
    %v390 = vrot.slane %v385, %v389
    %392 = vmatprep.subr.mxu0 0.0
    %393 = vmatpush1.msra.mxu0 %v384
    %394 = vmatprep.subr.mxu0 0.0
    %395 = vmatpush1.msra.mxu0 %v383
    %396 = vmatprep.subr.mxu0 0.0
    %397 = vmatpush1.msra.mxu0 %v382
    %398 = vmatprep.subr.mxu0 0.0
    %399 = vmatpush1.msra.mxu0 %v381
    %400 = vmatprep.subr.mxu0 0.0
    %401 = vmatpush1.msra.mxu0 %v380
    %402 = vmatprep.subr.mxu0 0.0
    %403 = vmatpush1.msra.mxu0 %v379
    %404 = vmatprep.subr.mxu0 0.0
    %405 = vmatpush1.msra.mxu0 %v378
    %406 = vmatprep.subr.mxu0 0.0
    %407 = vmatpush1.msra.mxu0 %v377
    %408 = vmatprep.subr.mxu0 0.0
    %409 = vmatpush1.msra.mxu0 %v376
    %410 = vmatprep.subr.mxu0 0.0
    %411 = vmatpush1.msra.mxu0 %v375
    %412 = vmatprep.subr.mxu0 0.0
    %413 = vmatpush1.msra.mxu0 %v374
    %414 = vmatprep.subr.mxu0 0.0
    %415 = vmatpush1.msra.mxu0 %v373
    %416 = vmatprep.subr.mxu0 0.0
    %417 = vmatpush1.msra.mxu0 %v372
    %418 = vmatprep.subr.mxu0 0.0
    %419 = vmatpush1.msra.mxu0 %v371
    %420 = vmatprep.subr.mxu0 0.0
    %421 = vmatpush1.msra.mxu0 %v370
    %422 = vmatprep.subr.mxu0 0.0
    %423 = vmatpush1.msra.mxu0 %v369
    %424 = vmatprep.subr.mxu0 0.0
    %425 = vmatpush2.msra.mxu0 0.0
    %426 = vmatprep.subr.mxu0 0.0
    %427 = vmatpush2.msra.mxu0 0.0
    %428 = vmatprep.subr.mxu0 0.0
    %429 = vmatpush2.msra.mxu0 0.0
    %430 = vmatprep.subr.mxu0 0.0
    %431 = vmatpush2.msra.mxu0 0.0
    %432 = vmatprep.subr.mxu0 0.0
    %433 = vmatpush2.msra.mxu0 0.0
    %434 = vmatprep.subr.mxu0 0.0
    %435 = vmatpush2.msra.mxu0 0.0
    %436 = vmatprep.subr.mxu0 0.0
    %437 = vmatpush2.msra.mxu0 0.0
    %438 = vmatprep.subr.mxu0 0.0
    %439 = vmatpush2.msra.mxu0 0.0
    %440 = vmatprep.subr.mxu0 0.0
    %441 = vmatpush2.msra.mxu0 0.0
    %442 = vmatprep.subr.mxu0 0.0
    %443 = vmatpush2.msra.mxu0 0.0
    %444 = vmatprep.subr.mxu0 0.0
    %445 = vmatpush2.msra.mxu0 0.0
    %446 = vmatprep.subr.mxu0 0.0
    %447 = vmatpush2.msra.mxu0 0.0
    %448 = vmatprep.subr.mxu0 0.0
    %449 = vmatpush2.msra.mxu0 0.0
    %450 = vmatprep.subr.mxu0 0.0
    %451 = vmatpush2.msra.mxu0 0.0
    %452 = vmatprep.subr.mxu0 0.0
    %453 = vmatpush2.msra.mxu0 0.0
    %454 = vmatprep.subr.mxu0 0.0
    %455 = vmatpush2.msra.mxu0 0.0
    %456 = vmatprep.mubr.f32.mxu0 0.0
    %457 = vmatmul.mubr.f32.gmra.mxu0 %v368
    %v458 = vpop.f32.mrf.mxu0
    %v459 = vadd.f32 %v390, %v458
    %v460 = vpop.f32.mrf.mxu0
    %461 = vdwg.mxu0
    %462 = vst [vmem:[#allocation11] sm:$0x3] %v459
    // Predicated region
    $region58: #{tpu_custom_call.1} parent=1 // pred_check
      _
    $region59: #{tpu_custom_call.1} parent=1 // pred_check_branch
      %464 = sbr.rel (0) target = $region61
    $region60: #{tpu_custom_call.1} parent=1 // pred_region
      %s466 = ssub.s32 32, 32
      %467 = vsyncadd [#allocation4], %s466
      %s469 = sshll.u32 [#allocation11], 4
      %s470 = int_to_ptr.vmem [resolvable:$true] %s469
      %472 = dma.vmem_to_hbm [thread:$0]  %s470, 32, %s9, [#allocation4]
    $region61: #{tpu_custom_call.1} parent=1 // pred_fallthru
      _
    // Predicated region
    $region62: #{tpu_custom_call.1} parent=1 // pred_check
      _
    $region63: #{tpu_custom_call.1} parent=1 // pred_check_branch
      %474 = sbr.rel (0) target = $region65
    $region64: #{tpu_custom_call.1} parent=1 // pred_region
      %475 = dma.done [#allocation4], 32
    $region65: #{tpu_custom_call.1} parent=1 // pred_fallthru
      _
    %476 = vsyncpa [#allocation3], 1
    %477 = vsyncpa [#allocation6], 1
    %478 = vsyncpa [#allocation9], 1
    %479 = vsyncpa [#allocation4], 1

</llo_original>
